<compile_context>
chip_gen: v5e
topology: v5e:2x2
jax: 0.10.0
libtpu: 0.0.40
codegen_flags: <defaults>
</compile_context>

<pallas_src>
import functools

import jax
import jax.numpy as jnp
from jax.experimental import pallas as pl
from jax.experimental.pallas import tpu as pltpu

LANES = 128
SUB_ROWS = 512  # rows per fused inner-loop chunk (512 x 128 f32 = 256 KiB)


def _device_config():
    """Per-TPU-generation tiling config (tile rows / 2-TC split / VMEM limit)."""
    try:
        kind = jax.devices()[0].device_kind.lower()
    except Exception:
        kind = ""
    if "v7" in kind:
        # 64 MiB VMEM/TC, ~3.2 TB/s HBM, 2 TensorCores per chip.
        return dict(tile_rows=8192, two_core=True, vmem_limit=48 << 20)
    if "v6" in kind:
        # 128 MiB VMEM (32 MiB scoped default), ~1.4 TB/s HBM, 1 TC.
        return dict(tile_rows=4096, two_core=False, vmem_limit=64 << 20)
    # v5e & fallback: 16 MiB scoped VMEM default, ~0.8 TB/s HBM, 1 TC.
    return dict(tile_rows=2048, two_core=False, vmem_limit=None)


def _bce_sum_kernel(x_ref, y_ref, out_ref, *, sub_rows, n_sub):
    """Accumulate per-lane partial sums of BCE-with-logits into out_ref (8,128).

    No masking: the wrapper pads logits with finfo(dtype).min and targets with
    0, so padded elements contribute exactly 0 to the sum.
    """
    i = pl.program_id(1)  # reduction axis (last)

    @pl.when(i == 0)
    def _():
        out_ref[...] = jnp.zeros_like(out_ref)

    def body(j, acc):
        r0 = pl.multiple_of(j * sub_rows, sub_rows)
        x = x_ref[pl.ds(r0, sub_rows), :].astype(jnp.float32)
        y = y_ref[pl.ds(r0, sub_rows), :].astype(jnp.float32)
        # Numerically stable BCE with logits (matches PyTorch):
        #   loss = max(x, 0) - x*y + log(1 + exp(-|x|))
        loss = jnp.maximum(x, 0.0) - x * y + jnp.log(1.0 + jnp.exp(-jnp.abs(x)))
        return acc + loss.reshape(-1, 8, LANES).sum(axis=0)

    acc = jax.lax.fori_loop(0, n_sub, body, jnp.zeros((8, LANES), jnp.float32))
    out_ref[...] += acc


def bce_with_logits_loss(y_pred, y_true):
    """Equivalent to F.binary_cross_entropy_with_logits(y_pred, y_true) (mean)."""
    assert y_pred.shape == y_true.shape
    n = y_pred.size
    assert n > 0

    if not jnp.issubdtype(y_pred.dtype, jnp.floating):
        y_pred = y_pred.astype(jnp.float32)
    if not jnp.issubdtype(y_true.dtype, jnp.floating):
        y_true = y_true.astype(jnp.float32)

    cfg = _device_config()

    x = y_pred.reshape(-1)  # free reshape, native dtype (kernel upcasts)
    y = y_true.reshape(-1)

    # Sublane alignment for packed dtypes: 8 rows (f32), 16 (bf16), 32 (int8/fp8).
    itemsize = min(x.dtype.itemsize, y.dtype.itemsize)
    rows_align = 8 * max(1, 4 // itemsize)

    rows_needed = pl.cdiv(n, LANES)
    tile_rows = min(cfg["tile_rows"], pl.cdiv(rows_needed, rows_align) * rows_align)
    tile_elems = tile_rows * LANES
    n_tiles = pl.cdiv(n, tile_elems)

    # 2-way split over the leading "parallel" grid axis: both TensorCores on
    # v7x stream HBM.  On single-TC chips (v5e/v6e) the split buys nothing, so
    # keep the single-split (minimal-padding) path there.
    num_splits = 2 if (cfg["two_core"] and n_tiles >= 2) else 1
    tiles_per_split = pl.cdiv(n_tiles, num_splits)
    total_tiles = num_splits * tiles_per_split
    n_pad = total_tiles * tile_elems

    if n_pad != n:
        # Pad logits with the most negative finite value of their dtype and
        # targets with 0: the loss of such a pair is exactly 0, so the kernel
        # needs no masking anywhere.
        x = jnp.pad(x, (0, n_pad - n), constant_values=jnp.finfo(x.dtype).min)
        y = jnp.pad(y, (0, n_pad - n), constant_values=0)
    x = x.reshape(n_pad // LANES, LANES)
    y = y.reshape(n_pad // LANES, LANES)

    # Fused sub-chunk loop keeps f32 temporaries at <= (SUB_ROWS, 128).
    sub_rows = SUB_ROWS if (tile_rows % SUB_ROWS == 0) else tile_rows
    n_sub = tile_rows // sub_rows

    kernel = functools.partial(_bce_sum_kernel, sub_rows=sub_rows, n_sub=n_sub)

    def in_map(c, i):
        # Interleaved tile assignment: global tile = i * num_splits + c.
        return (i * num_splits + c, 0)

    cp_kwargs = dict(dimension_semantics=("parallel", "arbitrary"))
    if cfg["vmem_limit"] is not None:
        cp_kwargs["vmem_limit_bytes"] = cfg["vmem_limit"]

    partials = pl.pallas_call(
        kernel,
        out_shape=jax.ShapeDtypeStruct((num_splits * 8, LANES), jnp.float32),
        grid_spec=pltpu.PrefetchScalarGridSpec(
            num_scalar_prefetch=0,
            grid=(num_splits, tiles_per_split),
            in_specs=[
                pl.BlockSpec((tile_rows, LANES), in_map),
                pl.BlockSpec((tile_rows, LANES), in_map),
            ],
            out_specs=pl.BlockSpec((8, LANES), lambda c, i: (c, 0)),
        ),
        compiler_params=pltpu.CompilerParams(**cp_kwargs),
    )(x, y)

    # Final tiny reduction (<= 2 KiB) + 'mean' reduction (PyTorch default).
    return (jnp.sum(partials) / n).astype(y_pred.dtype)


def _reference(y_pred, y_true):
    x = y_pred.astype(jnp.float32)
    y = y_true.astype(jnp.float32)
    loss = jnp.maximum(x, 0.0) - x * y + jnp.log1p(jnp.exp(-jnp.abs(x)))
    return jnp.mean(loss)


if __name__ == "__main__":
    key = jax.random.PRNGKey(0)
    k1, k2 = jax.random.split(key)

    # NCHW, like the PyTorch module would receive.
    y_pred = jax.random.normal(k1, (2, 4, 16, 16), dtype=jnp.float32)
    y_true = (jax.random.uniform(k2, (2, 4, 16, 16)) > 0.5).astype(jnp.float32)
    out = bce_with_logits_loss(y_pred, y_true)
    jax.block_until_ready(out)
    ref = _reference(y_pred, y_true)
    assert jnp.allclose(out, ref, atol=1e-5, rtol=1e-5), (out, ref)

    # Misaligned shape (exercises the tail-padding path).
    k3, k4 = jax.random.split(k1)
    yp2 = jax.random.normal(k3, (3, 5, 33, 47), dtype=jnp.float32)
    yt2 = (jax.random.uniform(k4, (3, 5, 33, 47)) > 0.5).astype(jnp.float32)
    out2 = bce_with_logits_loss(yp2, yt2)
    jax.block_until_ready(out2)
    ref2 = _reference(yp2, yt2)
    assert jnp.allclose(out2, ref2, atol=1e-5, rtol=1e-5), (out2, ref2)

    # Larger misaligned shape (exercises multi-tile accumulation + padding).
    k5, k6 = jax.random.split(k2)
    yp3 = jax.random.normal(k5, (8, 16, 63, 64), dtype=jnp.float32)
    yt3 = (jax.random.uniform(k6, (8, 16, 63, 64)) > 0.5).astype(jnp.float32)
    out3 = bce_with_logits_loss(yp3, yt3)
    jax.block_until_ready(out3)
    ref3 = _reference(yp3, yt3)
    assert jnp.allclose(out3, ref3, atol=1e-5, rtol=1e-5), (out3, ref3)

    print("KERNEL_OK")
</pallas_src>

<mosaic_0001>
module attributes {stable_mosaic.version = 11 : i64} {
  func.func @_bce_sum_kernel(%arg0: i32, %arg1: i32, %arg2: memref<16x128xf32, #tpu.memory_space<vmem>>, %arg3: memref<16x128xf32, #tpu.memory_space<vmem>>, %arg4: memref<8x128xf32, #tpu.memory_space<vmem>>) attributes {dimension_semantics = [#tpu.dimension_semantics<parallel>, #tpu.dimension_semantics<arbitrary>], iteration_bounds = array<i64: 1, 1>, scalar_prefetch = 0 : i64, scratch_operands = 0 : i64, tpu.core_type = #tpu.core_type<tc>, window_params = [{transform_indices = @transform_0, window_bounds = array<i64: 16, 128>}, {transform_indices = @transform_1, window_bounds = array<i64: 16, 128>}, {transform_indices = @transform_2, window_bounds = array<i64: 8, 128>}]} {
    %c0_i32 = arith.constant 0 : i32
    %0 = arith.cmpi eq, %arg1, %c0_i32 : i32
    %1 = arith.extui %0 : i1 to i32
    %c0_i32_0 = arith.constant 0 : i32
    %2 = arith.cmpi ne, %1, %c0_i32_0 : i32
    scf.if %2 {
      %cst_11 = arith.constant 0.000000e+00 : f32
      %28 = vector.broadcast %cst_11 : f32 to vector<8x128xf32>
      %c0_12 = arith.constant 0 : index
      %c0_13 = arith.constant 0 : index
      %29 = vector.load %arg4[%c0_12, %c0_13] : memref<8x128xf32, #tpu.memory_space<vmem>>, vector<8x128xf32>
      tpu.vector_store %arg4[%c0_12, %c0_13], %28 {strides = array<i32>} : memref<8x128xf32, #tpu.memory_space<vmem>>, vector<8x128xf32>,
    } else {
    }
    %cst = arith.constant 0.000000e+00 : f32
    %3 = vector.broadcast %cst : f32 to vector<8x128xf32>
    %c0_i32_1 = arith.constant 0 : i32
    %c16_i32 = arith.constant 16 : i32
    %4 = arith.muli %c0_i32_1, %c16_i32 : i32
    %5 = tpu.assume_multiple %4, 16 : i32
    %6 = arith.index_cast %5 : i32 to index
    %c0 = arith.constant 0 : index
    %7 = vector.load %arg2[%6, %c0] : memref<16x128xf32, #tpu.memory_space<vmem>>, vector<16x128xf32>
    %8 = arith.index_cast %5 : i32 to index
    %c0_2 = arith.constant 0 : index
    %9 = vector.load %arg3[%8, %c0_2] : memref<16x128xf32, #tpu.memory_space<vmem>>, vector<16x128xf32>
    %cst_3 = arith.constant 0.000000e+00 : f32
    %10 = vector.broadcast %cst_3 : f32 to vector<16x128xf32>
    %11 = arith.maximumf %7, %10 : vector<16x128xf32>
    %12 = arith.mulf %7, %9 : vector<16x128xf32>
    %13 = arith.subf %11, %12 : vector<16x128xf32>
    %14 = math.absf %7 : vector<16x128xf32>
    %cst_4 = arith.constant 0.000000e+00 : f32
    %15 = vector.broadcast %cst_4 : f32 to vector<16x128xf32>
    %16 = arith.subf %15, %14 : vector<16x128xf32>
    %17 = math.exp %16 : vector<16x128xf32>
    %cst_5 = arith.constant 1.000000e+00 : f32
    %18 = vector.broadcast %cst_5 : f32 to vector<16x128xf32>
    %19 = arith.addf %18, %17 : vector<16x128xf32>
    %20 = math.log %19 : vector<16x128xf32>
    %21 = arith.addf %13, %20 : vector<16x128xf32>
    %22 = vector.shape_cast %21 : vector<16x128xf32> to vector<2x8x128xf32>
    %cst_6 = arith.constant dense<0.000000e+00> : vector<8x128xf32>
    %23 = vector.multi_reduction <add>, %22, %cst_6 [0] : vector<2x8x128xf32> to vector<8x128xf32>
    %24 = arith.addf %3, %23 : vector<8x128xf32>
    %c1_i32 = arith.constant 1 : i32
    %c0_7 = arith.constant 0 : index
    %c0_8 = arith.constant 0 : index
    %25 = vector.load %arg4[%c0_7, %c0_8] : memref<8x128xf32, #tpu.memory_space<vmem>>, vector<8x128xf32>
    %26 = arith.addf %25, %24 : vector<8x128xf32>
    %c0_9 = arith.constant 0 : index
    %c0_10 = arith.constant 0 : index
    %27 = vector.load %arg4[%c0_9, %c0_10] : memref<8x128xf32, #tpu.memory_space<vmem>>, vector<8x128xf32>
    tpu.vector_store %arg4[%c0_9, %c0_10], %26 {strides = array<i32>} : memref<8x128xf32, #tpu.memory_space<vmem>>, vector<8x128xf32>,
    return
  }
  func.func @transform_0(%arg0: i32, %arg1: i32) -> (i32, i32) {
    %c1_i32 = arith.constant 1 : i32
    %0 = arith.muli %arg1, %c1_i32 : i32
    %1 = arith.addi %0, %arg0 : i32
    %c0_i32 = arith.constant 0 : i32
    %c0_i32_0 = arith.constant 0 : i32
    return %1, %c0_i32 : i32, i32
  }
  func.func @transform_1(%arg0: i32, %arg1: i32) -> (i32, i32) {
    %c1_i32 = arith.constant 1 : i32
    %0 = arith.muli %arg1, %c1_i32 : i32
    %1 = arith.addi %0, %arg0 : i32
    %c0_i32 = arith.constant 0 : i32
    %c0_i32_0 = arith.constant 0 : i32
    return %1, %c0_i32 : i32, i32
  }
  func.func @transform_2(%arg0: i32, %arg1: i32) -> (i32, i32) {
    %c0_i32 = arith.constant 0 : i32
    %c0_i32_0 = arith.constant 0 : i32
    return %arg0, %c0_i32 : i32, i32
  }
}

</mosaic_0001>

<llo_original>
// kernel: tpu_custom_call.1
$region0: #{tpu_custom_call.1}
  #allocation0 [shape = 'u32[]', space=smem, size = 0x4, offset = 0x4, fixed_abs, tag = 'smem constant byte address 0x4 - core index']
  #allocation1 [shape = 'u32[72,128]{1,0:T(1,128)}', space=vmem, size = 0x9000, scoped, tag = 'internal scratch']
  %s0 = inlined_call_operand.hbm [shape: f32[16,128], index: 0, kind: input, shape index: {}]
  %s1 = inlined_call_operand.hbm [shape: f32[16,128], index: 1, kind: input, shape index: {}]
  %s2 = inlined_call_operand.hbm [shape: f32[8,128], index: 2, kind: output, shape index: {}]
  %s3 = sld [smem:[#allocation0]]
  $region30: #{tpu_custom_call.1} parent=0
    _
  %s5 = ssub.s32 1, %s3
  %s6 = scalar_select 0, %s5, %s3
  $region1: #{tpu_custom_call.1} parent=0
    #allocation2 [shape = 'u8[8192]{0}', space=vmem, size = 0x2000, scoped, tag = 'input window, operand 0, single buffered']
    #allocation3 [shape = 's32[1]{0}', space=sflag, size = 0x4, scoped, tag = 'scoped memory for tpu_custom_call.1']
    #allocation4 [shape = 's32[1]{0}', space=sflag, size = 0x4, scoped, tag = 'scoped memory for tpu_custom_call.1']
    #allocation5 [shape = 'u8[8192]{0}', space=vmem, size = 0x2000, scoped, tag = 'input window, operand 1, single buffered']
    #allocation6 [shape = 's32[1]{0}', space=sflag, size = 0x4, scoped, tag = 'scoped memory for tpu_custom_call.1']
    #allocation7 [shape = 'u8[4096]{0}', space=vmem, size = 0x1000, scoped, tag = 'output window, operand 0, single buffered']
    %7 = vsyncpa [#allocation3], 0
    %8 = vsyncpa [#allocation6], 0
    %9 = vsyncpa [#allocation4], 0
    // Predicated region
    $region2: #{tpu_custom_call.1} parent=1 // pred_check
      _
    $region3: #{tpu_custom_call.1} parent=1 // pred_check_branch
      %11 = sbr.rel (0) target = $region5
    $region4: #{tpu_custom_call.1} parent=1 // pred_region
      %s12 = sadd.s32 0, 0
      %s13 = smul.u32 2, %s12
      %15 = vsyncadd [#allocation3], 0
      %s16 = smul.addr %s13, 8
      %s17 = scalar_lea.hbm %s0, %s16
      %s18 = sshll.u32 %s17, 4
      %s19 = int_to_ptr.hbm [resolvable:$true] %s18
      %s20 = sshll.u32 [#allocation2], 4
      %s21 = int_to_ptr.vmem [resolvable:$true] %s20
      %26 = dma.hbm_to_vmem [thread:$0]  %s19, 256, %s21, [#allocation3], 128, 128, 8
    $region5: #{tpu_custom_call.1} parent=1 // pred_fallthru
      _
    // Predicated region
    $region6: #{tpu_custom_call.1} parent=1 // pred_check
      _
    $region7: #{tpu_custom_call.1} parent=1 // pred_check_branch
      %28 = sbr.rel (0) target = $region9
    $region8: #{tpu_custom_call.1} parent=1 // pred_region
      %s29 = sadd.s32 0, 0
      %s30 = smul.u32 2, %s29
      %32 = vsyncadd [#allocation6], 0
      %s33 = smul.addr %s30, 8
      %s34 = scalar_lea.hbm %s1, %s33
      %s35 = sshll.u32 %s34, 4
      %s36 = int_to_ptr.hbm [resolvable:$true] %s35
      %s37 = sshll.u32 [#allocation5], 4
      %s38 = int_to_ptr.vmem [resolvable:$true] %s37
      %43 = dma.hbm_to_vmem [thread:$0]  %s36, 256, %s38, [#allocation6], 128, 128, 8
    $region9: #{tpu_custom_call.1} parent=1 // pred_fallthru
      _
    // Predicated region
    $region10: #{tpu_custom_call.1} parent=1 // pred_check
      _
    $region11: #{tpu_custom_call.1} parent=1 // pred_check_branch
      %45 = sbr.rel (0) target = $region13
    $region12: #{tpu_custom_call.1} parent=1 // pred_region
      %47 = dma.done [#allocation3], 256
    $region13: #{tpu_custom_call.1} parent=1 // pred_fallthru
      _
    // Predicated region
    $region14: #{tpu_custom_call.1} parent=1 // pred_check
      _
    $region15: #{tpu_custom_call.1} parent=1 // pred_check_branch
      %49 = sbr.rel (0) target = $region17
    $region16: #{tpu_custom_call.1} parent=1 // pred_region
      %51 = dma.done [#allocation6], 256
    $region17: #{tpu_custom_call.1} parent=1 // pred_fallthru
      _
    %s52 = sadd.s32 0, 0
    %s53 = smul.u32 2, %s52
    %s54 = sadd.s32 0, 0
    %s55 = smul.u32 2, %s54
    %p56 = scmp.eq.s32.totalorder 0, 0
    // Predicated region
    $region18: #{tpu_custom_call.1} parent=1 // pred_check
      %p57 = pneg %p56
    $region19: #{tpu_custom_call.1} parent=1 // pred_check_branch
      %59 = sbr.rel (%p57) target = $region21
    $region20: #{tpu_custom_call.1} parent=1 // pred_region
      %60 = vst [vmem:[#allocation7] sm:$0xff] 0.0
    $region21: #{tpu_custom_call.1} parent=1 // pred_fallthru
      _
    %v61 = vld [vmem:[#allocation2] sm:$0xff]
    %v62 = vld [vmem:[#allocation2 + $0x8] sm:$0xff]
    %v63 = vld [vmem:[#allocation5] sm:$0xff]
    %v64 = vld [vmem:[#allocation5 + $0x8] sm:$0xff]
    %v65 = vmax.f32 %v61, 0.0
    %v66 = vmax.f32 %v62, 0.0
    %v67 = vmul.f32 %v61, %v63
    %v68 = vmul.f32 %v62, %v64
    %v69 = vsub.f32 %v65, %v67
    %v70 = vsub.f32 %v66, %v68
    %v71 = vand.u32 2147483647, %v61
    %v72 = vand.u32 2147483647, %v62
    %v73 = vsub.f32 0.0, %v71
    %v74 = vsub.f32 0.0, %v72
    %v75 = vmul.f32 %v73, 1.442695
    %v76 = vpow.pop %v75
    %v77 = vmul.f32 %v74, 1.442695
    %v78 = vpow.pop %v77
    %v79 = vadd.f32 %v76, 1.0
    %v80 = vadd.f32 %v78, 1.0
    %v81 = vlog2.pop %v79
    %v82 = vmul.f32 %v81, 0.6931472
    %v83 = vlog2.pop %v80
    %v84 = vmul.f32 %v83, 0.6931472
    %v85 = vadd.f32 %v69, %v82
    %v86 = vadd.f32 %v70, %v84
    %v87 = vadd.f32 %v85, %v86
    %v88 = vadd.f32 %v87, 0.0
    %v89 = vld [vmem:[#allocation7] sm:$0xff]
    %v90 = vadd.f32 %v89, %v88
    %91 = vst [vmem:[#allocation7] sm:$0xff] %v90
    // Predicated region
    $region22: #{tpu_custom_call.1} parent=1 // pred_check
      _
    $region23: #{tpu_custom_call.1} parent=1 // pred_check_branch
      %93 = sbr.rel (0) target = $region25
    $region24: #{tpu_custom_call.1} parent=1 // pred_region
      %95 = vsyncadd [#allocation4], 0
      %s97 = sshll.u32 [#allocation7], 4
      %s98 = int_to_ptr.vmem [resolvable:$true] %s97
      %s99 = sshll.u32 %s2, 4
      %s100 = int_to_ptr.hbm [resolvable:$true] %s99
      %102 = dma.vmem_to_hbm [thread:$0]  %s98, 128, %s100, [#allocation4]
    $region25: #{tpu_custom_call.1} parent=1 // pred_fallthru
      _
    // Predicated region
    $region26: #{tpu_custom_call.1} parent=1 // pred_check
      _
    $region27: #{tpu_custom_call.1} parent=1 // pred_check_branch
      %104 = sbr.rel (0) target = $region29
    $region28: #{tpu_custom_call.1} parent=1 // pred_region
      %106 = dma.done [#allocation4], 128
    $region29: #{tpu_custom_call.1} parent=1 // pred_fallthru
      _
    %107 = vsyncpa [#allocation3], 1
    %108 = vsyncpa [#allocation6], 1
    %109 = vsyncpa [#allocation4], 1

</llo_original>
